<compile_context>
chip_gen: v7x
topology: tpu7x:2x2x1
jax: 0.10.0
libtpu: 0.0.40
codegen_flags: <defaults>
</compile_context>

<pallas_src>
import functools

import jax
import jax.numpy as jnp
from jax.experimental import pallas as pl
from jax.experimental.pallas import tpu as pltpu


# ---------------------------------------------------------------------------
# Kernel 1: fully parallel input projection  (T*B, E) @ (E, 3Hp) + b -> (T*B, 3Hp)
#           bf16 operands, f32 accumulation, bf16 output.
# ---------------------------------------------------------------------------
def input_proj_kernel(x_ref, w_ref, b_ref, o_ref):
    acc = jnp.dot(x_ref[...], w_ref[...], preferred_element_type=jnp.float32)
    o_ref[...] = (acc + b_ref[...]).astype(o_ref.dtype)


def input_projection(x2d, w_i_fused, b_i_fused, *, row_tile=512, n_tile=1024):
    M, E = x2d.shape
    N = w_i_fused.shape[1]
    tm = min(row_tile, M)
    tn = min(n_tile, N)
    return pl.pallas_call(
        input_proj_kernel,
        out_shape=jax.ShapeDtypeStruct((M, N), jnp.bfloat16),
        grid=(pl.cdiv(M, tm), pl.cdiv(N, tn)),
        in_specs=[
            pl.BlockSpec((tm, E), lambda i, j: (i, 0)),
            # Weight / bias blocks: constant per N-tile -> single-buffer (VMEM saving).
            pl.BlockSpec((E, tn), lambda i, j: (0, j),
                         pipeline_mode=pl.Buffered(1)),
            pl.BlockSpec((1, tn), lambda i, j: (0, j),
                         pipeline_mode=pl.Buffered(1)),
        ],
        out_specs=pl.BlockSpec((tm, tn), lambda i, j: (i, j)),
        compiler_params=pltpu.CompilerParams(
            dimension_semantics=("parallel", "parallel"),
            vmem_limit_bytes=32 * 1024 * 1024),
    )(x2d, w_i_fused, b_i_fused)


# ---------------------------------------------------------------------------
# Kernel 2: serial GRU recurrence.  Grid = (batch tiles [parallel], time chunks
# [arbitrary]).  Hidden state carried directly in out_ref (constant block index
# across the time axis -> VMEM resident accumulator).
# ---------------------------------------------------------------------------
def gru_chunk_kernel(xp_ref,      # (TT, TB, 3Hp) bf16  precomputed input projections
                     wh_ref,      # (Hp, 3Hp)     bf16  fused hidden weights [r|z|n]
                     bhn_ref,     # (1, Hp)       f32   b_hn (stays inside r-gate)
                     out_ref,     # (TB, Hp)      f32   carried / final hidden state
                     *, seq_len, chunk, needs_mask):
    c = pl.program_id(1)          # time-chunk index ('arbitrary' axis)
    Hp = out_ref.shape[-1]

    @pl.when(c == 0)
    def _init():
        out_ref[...] = jnp.zeros_like(out_ref)

    w_h = wh_ref[...]             # hoisted out of the unrolled loop
    b_hn = bhn_ref[...]
    base_t = c * chunk

    def step(t, h):                                                  # h: (TB, Hp) f32
        xp = xp_ref[t]                                               # (TB, 3Hp) bf16
        hp = jnp.dot(h.astype(jnp.bfloat16), w_h,                    # bf16 MXU, f32 acc
                     preferred_element_type=jnp.float32)             # (TB, 3Hp)
        # Gate math kept in f32 (bf16 + f32 promotes to f32).
        rz = jax.nn.sigmoid(xp[:, :2 * Hp] + hp[:, :2 * Hp])         # fused r|z
        r = rz[:, :Hp]
        z = rz[:, Hp:]
        n = jnp.tanh(xp[:, 2 * Hp:] + r * (hp[:, 2 * Hp:] + b_hn))
        h_new = (1.0 - z) * n + z * h
        if needs_mask:   # static: only emitted when T % chunk != 0
            h_new = jnp.where(base_t + t < seq_len, h_new, h)
        return h_new

    h = jax.lax.fori_loop(0, chunk, step, out_ref[...], unroll=True)
    out_ref[...] = h   # constant block index across c: last write wins


# ---------------------------------------------------------------------------
# Wrapper
# ---------------------------------------------------------------------------
def char_model_forward(x_ids, params, *, row_tile=512, n_tile=1024,
                       time_chunk=16, batch_tile=256):
    """x_ids: int32 (B, T).  Returns h_n: (1, B, H), like PyTorch GRU."""
    emb_t = params["emb_bf16"]                 # (V, E) bf16
    B, T = x_ids.shape
    E = emb_t.shape[1]
    H, Hp = params["H"], params["Hp"]

    # Embedding gather, directly time-major: (T, B, E) in bf16 (half the traffic).
    # TODO(synk): fuse this gather into the projection kernel (scalar-prefetch row
    # gather) at production vocab/seq sizes instead of materializing it in HBM.
    emb_tbe = emb_t[x_ids.T]

    # Hoisted input projection: one big parallel GEMM over all T*B rows.
    x_proj = input_projection(
        emb_tbe.reshape(T * B, E), params["w_i_fused"], params["b_i_fused"],
        row_tile=row_tile, n_tile=n_tile,
    ).reshape(T, B, 3 * Hp)                    # bf16

    TT = min(time_chunk, T)
    TB = min(batch_tile, B)
    needs_mask = (T % TT) != 0                 # static Python check

    h_last = pl.pallas_call(
        functools.partial(gru_chunk_kernel, seq_len=T, chunk=TT,
                          needs_mask=needs_mask),
        out_shape=jax.ShapeDtypeStruct((B, Hp), jnp.float32),
        grid=(pl.cdiv(B, TB), pl.cdiv(T, TT)),
        in_specs=[
            pl.BlockSpec((TT, TB, 3 * Hp), lambda b, c: (c, b, 0)),   # x_proj chunk
            pl.BlockSpec((Hp, 3 * Hp), lambda b, c: (0, 0),           # fused W_h
                         pipeline_mode=pl.Buffered(1)),
            pl.BlockSpec((1, Hp), lambda b, c: (0, 0),                # b_hn
                         pipeline_mode=pl.Buffered(1)),
        ],
        out_specs=pl.BlockSpec((TB, Hp), lambda b, c: (b, 0)),
        compiler_params=pltpu.CompilerParams(
            dimension_semantics=("parallel", "arbitrary"),
            vmem_limit_bytes=32 * 1024 * 1024),
    )(x_proj, params["w_h_fused"], params["b_hn"])

    return h_last[:, :H][None]                 # (1, B, H) == PyTorch h_n


# ---------------------------------------------------------------------------
# Parameters (PyTorch GRU layout + fused, lane-padded packing for the kernels)
# ---------------------------------------------------------------------------
def init_params(key, vocab_size, emb_dim, hidden_dim, *, lane=128):
    ks = jax.random.split(key, 5)
    H = hidden_dim
    Hp = ((H + lane - 1) // lane) * lane       # per-gate lane-aligned hidden dim
    bound = 1.0 / float(hidden_dim) ** 0.5
    u = lambda k, shape: jax.random.uniform(k, shape, jnp.float32, -bound, bound)

    emb = jax.random.normal(ks[0], (vocab_size, emb_dim), jnp.float32)
    w_ih = u(ks[1], (3 * H, emb_dim))          # rows [r; z; n], PyTorch layout
    w_hh = u(ks[2], (3 * H, H))
    b_ih = u(ks[3], (3 * H,))
    b_hh = u(ks[4], (3 * H,))

    def fuse_T_pad(w):        # (3H, K) -> (K, 3Hp): per-gate transpose + zero pad
        K = w.shape[1]
        out = jnp.zeros((K, 3 * Hp), jnp.float32)
        for g in range(3):
            out = out.at[:, g * Hp:g * Hp + H].set(w[g * H:(g + 1) * H, :].T)
        return out

    def fuse_bias_pad(b):     # (3H,) -> (1, 3Hp)
        out = jnp.zeros((1, 3 * Hp), jnp.float32)
        for g in range(3):
            out = out.at[0, g * Hp:g * Hp + H].set(b[g * H:(g + 1) * H])
        return out

    w_i_fused = fuse_T_pad(w_ih)                                        # (E, 3Hp)
    w_h_fused = jnp.zeros((Hp, 3 * Hp), jnp.float32).at[:H].set(fuse_T_pad(w_hh))
    # b_ir+b_hr, b_iz+b_hz and b_in fold into the input projection;
    # b_hn must stay separate (it sits inside the r-gated term).
    b_i_fused = fuse_bias_pad(
        jnp.concatenate([b_ih[:2 * H] + b_hh[:2 * H], b_ih[2 * H:]]))
    b_hn = jnp.zeros((1, Hp), jnp.float32).at[0, :H].set(b_hh[2 * H:])

    return {
        # raw PyTorch-layout weights (used by the pure-JAX reference)
        "emb": emb, "w_ih": w_ih, "w_hh": w_hh, "b_ih": b_ih, "b_hh": b_hh,
        # bf16 / fused / lane-padded packing used by the kernels
        "emb_bf16": emb.astype(jnp.bfloat16),
        "w_i_fused": w_i_fused.astype(jnp.bfloat16),
        "w_h_fused": w_h_fused.astype(jnp.bfloat16),
        "b_i_fused": b_i_fused,     # f32 (added to the f32 accumulator)
        "b_hn": b_hn,               # f32
        "H": H, "Hp": Hp,
    }


# ---------------------------------------------------------------------------
# Pure-JAX f32 reference (standard PyTorch GRU equations on the raw weights)
# ---------------------------------------------------------------------------
def reference_forward(x_ids, params):
    emb = params["emb"][x_ids]                    # (B, T, E)
    B = emb.shape[0]
    H = params["w_hh"].shape[1]
    w_ih, w_hh = params["w_ih"], params["w_hh"]
    b_ih, b_hh = params["b_ih"], params["b_hh"]
    W_ir, W_iz, W_in = w_ih[:H], w_ih[H:2 * H], w_ih[2 * H:]
    W_hr, W_hz, W_hn = w_hh[:H], w_hh[H:2 * H], w_hh[2 * H:]
    b_ir, b_iz, b_in = b_ih[:H], b_ih[H:2 * H], b_ih[2 * H:]
    b_hr, b_hz, b_hn = b_hh[:H], b_hh[H:2 * H], b_hh[2 * H:]

    def step(h, x_t):
        r = jax.nn.sigmoid(x_t @ W_ir.T + b_ir + h @ W_hr.T + b_hr)
        z = jax.nn.sigmoid(x_t @ W_iz.T + b_iz + h @ W_hz.T + b_hz)
        n = jnp.tanh(x_t @ W_in.T + b_in + r * (h @ W_hn.T + b_hn))
        return (1.0 - z) * n + z * h, None

    h0 = jnp.zeros((B, H), jnp.float32)
    h_last, _ = jax.lax.scan(step, h0, jnp.transpose(emb, (1, 0, 2)))
    return h_last[None]                           # (1, B, H)


if __name__ == "__main__":
    VOCAB, EMB, HIDDEN = 16, 16, 32
    B, T = 2, 8

    key = jax.random.PRNGKey(0)
    k_params, k_data = jax.random.split(key)
    params = init_params(k_params, VOCAB, EMB, HIDDEN)
    x_ids = jax.random.randint(k_data, (B, T), 0, VOCAB, dtype=jnp.int32)

    out = char_model_forward(x_ids, params)
    out = jax.block_until_ready(out)

    ref = reference_forward(x_ids, params)
    assert out.shape == (1, B, HIDDEN)
    # bf16 matmul operands + bf16 x_proj intermediate -> relaxed tolerance vs f32 ref.
    assert jnp.allclose(out, ref, atol=3e-2, rtol=3e-2)
    print("KERNEL_OK")
</pallas_src>

<mosaic_0001>
module attributes {stable_mosaic.version = 11 : i64} {
  func.func @input_proj_kernel(%arg0: i32, %arg1: i32, %arg2: memref<16x16xbf16, #tpu.memory_space<vmem>>, %arg3: memref<16x384xbf16, #tpu.memory_space<vmem>>, %arg4: memref<1x384xf32, #tpu.memory_space<vmem>>, %arg5: memref<16x384xbf16, #tpu.memory_space<vmem>>) attributes {dimension_semantics = [#tpu.dimension_semantics<parallel>, #tpu.dimension_semantics<parallel>], iteration_bounds = array<i64: 1, 1>, scalar_prefetch = 0 : i64, scratch_operands = 0 : i64, tpu.core_type = #tpu.core_type<tc>, window_params = [{transform_indices = @transform_0, window_bounds = array<i64: 16, 16>}, {pipeline_mode = #tpu.pipeline_mode<synchronous>, transform_indices = @transform_1, window_bounds = array<i64: 16, 384>}, {pipeline_mode = #tpu.pipeline_mode<synchronous>, transform_indices = @transform_2, window_bounds = array<i64: 1, 384>}, {transform_indices = @transform_3, window_bounds = array<i64: 16, 384>}]} {
    %c0 = arith.constant 0 : index
    %c0_0 = arith.constant 0 : index
    %0 = vector.load %arg2[%c0, %c0_0] : memref<16x16xbf16, #tpu.memory_space<vmem>>, vector<16x16xbf16>
    %c0_1 = arith.constant 0 : index
    %c0_2 = arith.constant 0 : index
    %1 = vector.load %arg3[%c0_1, %c0_2] : memref<16x384xbf16, #tpu.memory_space<vmem>>, vector<16x384xbf16>
    %cst = arith.constant dense<0.000000e+00> : vector<16x384xf32>
    %2 = tpu.matmul %0, %1, %cst {dimension_numbers = #tpu.dot_dimension_numbers<[1], [0], [0], [1], [0, 0, 1, 1], [], []>} : vector<16x16xbf16>, vector<16x384xbf16>, vector<16x384xf32> -> vector<16x384xf32>
    %c0_3 = arith.constant 0 : index
    %c0_4 = arith.constant 0 : index
    %3 = vector.load %arg4[%c0_3, %c0_4] : memref<1x384xf32, #tpu.memory_space<vmem>>, vector<1x384xf32>
    %4 = vector.broadcast %3 : vector<1x384xf32> to vector<16x384xf32>
    %5 = arith.addf %2, %4 : vector<16x384xf32>
    %6 = arith.truncf %5 : vector<16x384xf32> to vector<16x384xbf16>
    %c0_5 = arith.constant 0 : index
    %c0_6 = arith.constant 0 : index
    %7 = vector.load %arg5[%c0_5, %c0_6] : memref<16x384xbf16, #tpu.memory_space<vmem>>, vector<16x384xbf16>
    tpu.vector_store %arg5[%c0_5, %c0_6], %6 {strides = array<i32>} : memref<16x384xbf16, #tpu.memory_space<vmem>>, vector<16x384xbf16>,
    return
  }
  func.func @transform_0(%arg0: i32, %arg1: i32) -> (i32, i32) {
    %c0_i32 = arith.constant 0 : i32
    %c0_i32_0 = arith.constant 0 : i32
    return %arg0, %c0_i32 : i32, i32
  }
  func.func @transform_1(%arg0: i32, %arg1: i32) -> (i32, i32) {
    %c0_i32 = arith.constant 0 : i32
    %c0_i32_0 = arith.constant 0 : i32
    return %c0_i32, %arg1 : i32, i32
  }
  func.func @transform_2(%arg0: i32, %arg1: i32) -> (i32, i32) {
    %c0_i32 = arith.constant 0 : i32
    %c0_i32_0 = arith.constant 0 : i32
    return %c0_i32, %arg1 : i32, i32
  }
  func.func @transform_3(%arg0: i32, %arg1: i32) -> (i32, i32) {
    %c0_i32 = arith.constant 0 : i32
    return %arg0, %arg1 : i32, i32
  }
}

</mosaic_0001>

<llo_original>
// kernel: tpu_custom_call.1
$region0: #{tpu_custom_call.1}
  #allocation0 [shape = 'u32[]', space=smem, size = 0x4, offset = 0x4, fixed_abs, tag = 'smem constant byte address 0x4 - core index']
  #allocation1 [shape = 'u32[144,128]{1,0:T(1,128)}', space=vmem, size = 0x12000, scoped, tag = 'internal scratch']
  %s0 = inlined_call_operand.hbm [shape: bf16[16,16], index: 0, kind: input, shape index: {}]
  %s1 = inlined_call_operand.hbm [shape: bf16[16,384], index: 1, kind: input, shape index: {}]
  %s2 = inlined_call_operand.vmem [shape: f32[1,384], index: 2, kind: input, shape index: {}]
  %s3 = inlined_call_operand.hbm [shape: bf16[16,384], index: 3, kind: output, shape index: {}]
  %s4 = sld [smem:[#allocation0]]
  $region30: #{tpu_custom_call.1} parent=0
    _
  %s6 = ssub.s32 1, %s4
  %s7 = scalar_select 0, %s6, %s4
  $region1: #{tpu_custom_call.1} parent=0
    #allocation2 [shape = 'u8[4096]{0}', space=vmem, size = 0x1000, scoped, tag = 'input window, operand 0, single buffered']
    #allocation3 [shape = 's32[1]{0}', space=sflag, size = 0x4, scoped, tag = 'scoped memory for tpu_custom_call.1']
    #allocation4 [shape = 's32[1]{0}', space=sflag, size = 0x4, scoped, tag = 'scoped memory for tpu_custom_call.1']
    #allocation5 [shape = 'u8[12288]{0}', space=vmem, size = 0x3000, scoped, tag = 'input window, operand 1, single buffered']
    #allocation6 [shape = 's32[1]{0}', space=sflag, size = 0x4, scoped, tag = 'scoped memory for tpu_custom_call.1']
    #allocation7 [shape = 'u8[12288]{0}', space=vmem, size = 0x3000, scoped, tag = 'output window, operand 0, single buffered']
    %8 = vsyncpa [#allocation3], 0
    %9 = vsyncpa [#allocation6], 0
    %10 = vsyncpa [#allocation4], 0
    // Predicated region
    $region2: #{tpu_custom_call.1} parent=1 // pred_check
      _
    $region3: #{tpu_custom_call.1} parent=1 // pred_check_branch
      %12 = sbr.rel (0) target = $region5
    $region4: #{tpu_custom_call.1} parent=1 // pred_region
      %s14 = ssub.s32 128, 128
      %15 = vsyncadd [#allocation3], %s14
      %s16 = sshll.u32 [#allocation2], 4
      %s17 = int_to_ptr.vmem [resolvable:$true] %s16
      %22 = dma.hbm_to_vmem [thread:$0]  %s0, 128, %s17, [#allocation3], 64, 64, 4
    $region5: #{tpu_custom_call.1} parent=1 // pred_fallthru
      _
    // Predicated region
    $region6: #{tpu_custom_call.1} parent=1 // pred_check
      _
    $region7: #{tpu_custom_call.1} parent=1 // pred_check_branch
      %24 = sbr.rel (0) target = $region9
    $region8: #{tpu_custom_call.1} parent=1 // pred_region
      %s26 = ssub.s32 384, 384
      %27 = vsyncadd [#allocation6], %s26
      %s28 = sshll.u32 [#allocation5], 4
      %s29 = int_to_ptr.vmem [resolvable:$true] %s28
      %34 = dma.hbm_to_vmem [thread:$0]  %s1, 384, %s29, [#allocation6], 192, 192, 12
    $region9: #{tpu_custom_call.1} parent=1 // pred_fallthru
      _
    // Predicated region
    $region10: #{tpu_custom_call.1} parent=1 // pred_check
      _
    $region11: #{tpu_custom_call.1} parent=1 // pred_check_branch
      %36 = sbr.rel (0) target = $region13
    $region12: #{tpu_custom_call.1} parent=1 // pred_region
      _
    $region13: #{tpu_custom_call.1} parent=1 // pred_fallthru
      _
    // Predicated region
    $region14: #{tpu_custom_call.1} parent=1 // pred_check
      _
    $region15: #{tpu_custom_call.1} parent=1 // pred_check_branch
      %38 = sbr.rel (0) target = $region17
    $region16: #{tpu_custom_call.1} parent=1 // pred_region
      %39 = dma.done [#allocation3], 128
    $region17: #{tpu_custom_call.1} parent=1 // pred_fallthru
      _
    // Predicated region
    $region18: #{tpu_custom_call.1} parent=1 // pred_check
      _
    $region19: #{tpu_custom_call.1} parent=1 // pred_check_branch
      %41 = sbr.rel (0) target = $region21
    $region20: #{tpu_custom_call.1} parent=1 // pred_region
      %42 = dma.done [#allocation6], 384
    $region21: #{tpu_custom_call.1} parent=1 // pred_fallthru
      _
    %v44 = vld [vmem:[#allocation2] sm:$0xf]
    %v45 = vld [vmem:[#allocation2 + $0x4] sm:$0xf]
    %v46 = vld [vmem:[#allocation5] sm:$0xff]
    %v47 = vld [vmem:[#allocation5 + $0x8] sm:$0xf]
    %v48 = vld [vmem:[#allocation5 + $0xc] sm:$0xff]
    %v49 = vld [vmem:[#allocation5 + $0x14] sm:$0xf]
    %v50 = vld [vmem:[%s2] sm:$0x7]
    %v52 = vlaneseq
    %v53 = vshrl.u32 %v52, 7
    %v54 = vsub.s32 0, %v53
    %v55 = vrot.slane %v50, %v54
    %v56 = vlaneseq
    %v57 = vshrl.u32 %v56, 7
    %v58 = vsub.s32 1, %v57
    %v59 = vrot.slane %v50, %v58
    %v60 = vlaneseq
    %v61 = vshrl.u32 %v60, 7
    %v62 = vsub.s32 2, %v61
    %v63 = vrot.slane %v50, %v62
    %v69 = vunpack.c.l.b16 %v44
    %v70 = vunpack.c.l.b16 %v45
    %v71 = vpack.c.b16 %v70, %v69
    %v76 = vunpack.c.l.b16 %v46
    %v77 = vunpack.c.h.b16 %v46
    %v78 = vunpack.c.l.b16 %v47
    %v79 = vunpack.c.l.b16 %v48
    %v80 = vunpack.c.h.b16 %v48
    %v81 = vunpack.c.l.b16 %v49
    %v82 = vpack.c.b16 %v79, %v76
    %v83 = vpack.c.b16 %v80, %v77
    %v84 = vpack.c.b16 %v81, %v78
    %vm88 = vcmask 130048
    %v90 = vsel %vm88, %v71, 0
    %92 = vmatprep.subr.bf16.mxu0 %v83
    %93 = vmatpush1.bf16.msra.mxu0 %v82
    %94 = vmatprep.subr.bf16.mxu0 0
    %95 = vmatpush1.bf16.msra.mxu0 0
    %96 = vmatprep.subr.bf16.mxu0 0
    %97 = vmatpush1.bf16.msra.mxu0 0
    %98 = vmatprep.subr.bf16.mxu0 0
    %99 = vmatpush1.bf16.msra.mxu0 0
    %100 = vmatprep.subr.bf16.mxu0 0
    %101 = vmatpush1.bf16.msra.mxu0 0
    %102 = vmatprep.subr.bf16.mxu0 0
    %103 = vmatpush1.bf16.msra.mxu0 0
    %104 = vmatprep.subr.bf16.mxu0 0
    %105 = vmatpush1.bf16.msra.mxu0 0
    %106 = vmatprep.subr.bf16.mxu0 0
    %107 = vmatpush1.bf16.msra.mxu0 0
    %108 = vmatprep.subr.bf16.mxu0 0
    %109 = vmatpush1.bf16.msra.mxu0 0
    %110 = vmatprep.subr.bf16.mxu0 0
    %111 = vmatpush1.bf16.msra.mxu0 0
    %112 = vmatprep.subr.bf16.mxu0 0
    %113 = vmatpush1.bf16.msra.mxu0 0
    %114 = vmatprep.subr.bf16.mxu0 0
    %115 = vmatpush1.bf16.msra.mxu0 0
    %116 = vmatprep.subr.bf16.mxu0 0
    %117 = vmatpush1.bf16.msra.mxu0 0
    %118 = vmatprep.subr.bf16.mxu0 0
    %119 = vmatpush1.bf16.msra.mxu0 0
    %120 = vmatprep.subr.bf16.mxu0 0
    %121 = vmatpush1.bf16.msra.mxu0 0
    %122 = vmatprep.subr.bf16.mxu0 0
    %123 = vmatpush1.bf16.msra.mxu0 0
    %124 = vmatprep.mubr.bf16.mxu0 0
    %125 = vmatmul.mubr.bf16.gmra.mrb[0].mxu0 %v90
    %v126 = vpop.f32.mrb[0].mxu0
    %v127 = vadd.f32 %v55, %v126
    %v128 = vpop.f32.mrb[0].mxu0
    %v129 = vadd.f32 %v59, %v128
    %v130 = vpop.f32.mrb[0].mxu0
    %v131 = vadd.f32 %v55, %v130
    %v132 = vpop.f32.mrb[0].mxu0
    %v133 = vadd.f32 %v59, %v132
    %134 = vdwg.mxu0
    %135 = vmatprep.subr.bf16.mxu0 0
    %136 = vmatpush1.bf16.msra.mxu0 %v84
    %137 = vmatprep.subr.bf16.mxu0 0
    %138 = vmatpush1.bf16.msra.mxu0 0
    %139 = vmatprep.subr.bf16.mxu0 0
    %140 = vmatpush1.bf16.msra.mxu0 0
    %141 = vmatprep.subr.bf16.mxu0 0
    %142 = vmatpush1.bf16.msra.mxu0 0
    %143 = vmatprep.subr.bf16.mxu0 0
    %144 = vmatpush1.bf16.msra.mxu0 0
    %145 = vmatprep.subr.bf16.mxu0 0
    %146 = vmatpush1.bf16.msra.mxu0 0
    %147 = vmatprep.subr.bf16.mxu0 0
    %148 = vmatpush1.bf16.msra.mxu0 0
    %149 = vmatprep.subr.bf16.mxu0 0
    %150 = vmatpush1.bf16.msra.mxu0 0
    %151 = vmatprep.subr.bf16.mxu0 0
    %152 = vmatpush1.bf16.msra.mxu0 0
    %153 = vmatprep.subr.bf16.mxu0 0
    %154 = vmatpush1.bf16.msra.mxu0 0
    %155 = vmatprep.subr.bf16.mxu0 0
    %156 = vmatpush1.bf16.msra.mxu0 0
    %157 = vmatprep.subr.bf16.mxu0 0
    %158 = vmatpush1.bf16.msra.mxu0 0
    %159 = vmatprep.subr.bf16.mxu0 0
    %160 = vmatpush1.bf16.msra.mxu0 0
    %161 = vmatprep.subr.bf16.mxu0 0
    %162 = vmatpush1.bf16.msra.mxu0 0
    %163 = vmatprep.subr.bf16.mxu0 0
    %164 = vmatpush1.bf16.msra.mxu0 0
    %165 = vmatprep.subr.bf16.mxu0 0
    %166 = vmatpush1.bf16.msra.mxu0 0
    %167 = vmatprep.mubr.bf16.mxu0 0
    %168 = vmatmul.mubr.bf16.gmra.mrb[0].mxu0 %v90
    %v169 = vpop.f32.mrb[0].mxu0
    %v170 = vadd.f32 %v63, %v169
    %v171 = vpop.f32.mrb[0].mxu0
    %v172 = vpop.f32.mrb[0].mxu0
    %v173 = vadd.f32 %v63, %v172
    %v174 = vpop.f32.mrb[0].mxu0
    %175 = vdwg.mxu0
    %v176 = vpack.c.bf16 %v131, %v127
    %v177 = vpack.c.bf16 %v133, %v129
    %v178 = vpack.c.bf16 %v173, %v170
    %v182 = vunpack.c.l.b16 %v176
    %v183 = vunpack.c.l.b16 %v177
    %v184 = vunpack.c.l.b16 %v178
    %v185 = vunpack.c.h.b16 %v176
    %v186 = vunpack.c.h.b16 %v177
    %v187 = vunpack.c.h.b16 %v178
    %v188 = vpack.c.b16 %v183, %v182
    %v189 = vpack.c.b16 %v184, %v184
    %v190 = vpack.c.b16 %v186, %v185
    %v191 = vpack.c.b16 %v187, %v187
    %196 = vst [vmem:[#allocation7] sm:$0xff] %v188
    %197 = vst [vmem:[#allocation7 + $0x8] sm:$0xf] %v189
    %198 = vst [vmem:[#allocation7 + $0xc] sm:$0xff] %v190
    %199 = vst [vmem:[#allocation7 + $0x14] sm:$0xf] %v191
    // Predicated region
    $region22: #{tpu_custom_call.1} parent=1 // pred_check
      _
    $region23: #{tpu_custom_call.1} parent=1 // pred_check_branch
      %201 = sbr.rel (0) target = $region25
    $region24: #{tpu_custom_call.1} parent=1 // pred_region
      %s203 = ssub.s32 384, 384
      %204 = vsyncadd [#allocation4], %s203
      %s205 = sshll.u32 [#allocation7], 4
      %s206 = int_to_ptr.vmem [resolvable:$true] %s205
      %211 = dma.vmem_to_hbm [thread:$0]  %s206, 384, %s3, [#allocation4], 192, 192, 12
    $region25: #{tpu_custom_call.1} parent=1 // pred_fallthru
      _
    // Predicated region
    $region26: #{tpu_custom_call.1} parent=1 // pred_check
      _
    $region27: #{tpu_custom_call.1} parent=1 // pred_check_branch
      %213 = sbr.rel (0) target = $region29
    $region28: #{tpu_custom_call.1} parent=1 // pred_region
      %214 = dma.done [#allocation4], 384
    $region29: #{tpu_custom_call.1} parent=1 // pred_fallthru
      _
    %215 = vsyncpa [#allocation3], 1
    %216 = vsyncpa [#allocation6], 1
    %217 = vsyncpa [#allocation4], 1

</llo_original>
